<compile_context>
chip_gen: v6e
topology: v6e:2x2x1
jax: 0.10.0
libtpu: 0.0.40
codegen_flags: <defaults>
</compile_context>

<pallas_src>
import math
import jax
import jax.numpy as jnp
from jax.experimental import pallas as pl
from jax.experimental.pallas import tpu as pltpu

# ------------------------- configuration (conv_cfg) -------------------------
# conv_cfg = (in_channels, out_channels, kernel_size, stride, padding)
CIN, COUT = 4, 8
KH, KW = 3, 3
SH, SW = 2, 2
PH, PW = 1, 1
LEAKY_SLOPE = 0.01
BN_EPS = 1e-5

C2 = 2 * COUT                # packed real|imag channel width (16)
K = CIN * KH * KW            # im2col depth per complex part (36)
AK = 8 * 2 * K               # lane-dense packed-patch width (576): 8 pixels folded
assert C2 * 8 == 128, "lane-dense layout assumes 2*COUT*8 == 128"

NCORES = 2                   # leading "parallel" axis of pass 1 (v7x: 2 TCs; v5e/v6e: loop)


# ------------------------------ Pallas kernels --------------------------------
def _conv_stats_kernel(a_ref, w_ref, c_ref, stats_ref):
    """Pass 1: fused complex conv as ONE lane-dense MXU matmul + global BN sums.

    Lane layout of c: lane l = 16*r + ch, r = pixel-in-group (0..7),
    ch in [0,8) -> cr, ch in [8,16) -> ci.
    """
    c = jnp.dot(a_ref[...], w_ref[...], preferred_element_type=jnp.float32)  # [tm, 128]
    c_ref[...] = c

    @pl.when(pl.program_id(1) == 0)
    def _init():
        stats_ref[...] = jnp.zeros_like(stats_ref)

    # per-tile partial BN statistics, accumulated across the "arbitrary" axis.
    s0 = jnp.sum(c, axis=0, keepdims=True)          # [1,128]  Σ c
    s1 = jnp.sum(c * c, axis=0, keepdims=True)      # [1,128]  Σ c²
    # lane-rotate left by 8 (two static slices + concat -> deterministic):
    # lower half of every 16-lane group then pairs cr with its ci.
    c_swap = jnp.concatenate([c[:, 8:], c[:, :8]], axis=1)
    sx = jnp.sum(c * c_swap, axis=0, keepdims=True)  # valid at lanes 16r+ch, ch<8

    stats_ref[0:1, :] = stats_ref[0:1, :] + s0
    stats_ref[1:2, :] = stats_ref[1:2, :] + s1
    stats_ref[2:3, :] = stats_ref[2:3, :] + sx


def _whiten_act_kernel(c_ref, z_ref, b_ref, y_ref):
    """Pass 2 (lane-dense): whiten+affine as one [tm,128]@[128,128] matmul,
    then bias + complex leaky-ReLU, all at full 128-lane width."""
    y = jnp.dot(c_ref[...], z_ref[...], preferred_element_type=jnp.float32) + b_ref[...]
    y_ref[...] = jnp.where(y >= 0, y, LEAKY_SLOPE * y)


# ------------------------------- glue / wrapper -------------------------------
def _im2col(x):
    """x: [N, Cin, H, W] -> patches [N*OH*OW, Cin*KH*KW] (Cin slowest, then KH, KW)."""
    N, C, H, W = x.shape
    OH = (H + 2 * PH - KH) // SH + 1
    OW = (W + 2 * PW - KW) // SW + 1
    xp = jnp.pad(x, ((0, 0), (0, 0), (PH, PH), (PW, PW)))
    cols = []
    for kh in range(KH):
        for kw in range(KW):
            cols.append(xp[:, :, kh:kh + SH * OH:SH, kw:kw + SW * OW:SW])  # [N,C,OH,OW]
    patches = jnp.stack(cols, axis=2)                  # [N, C, KH*KW, OH, OW]
    patches = patches.reshape(N, C * KH * KW, OH, OW)  # matches torch weight.reshape order
    patches = patches.transpose(0, 2, 3, 1).reshape(N * OH * OW, C * KH * KW)
    return patches, (N, OH, OW)


def encoder_forward(xr, xi, params, *, tile1_rows=1024, tile2_rows=4096):
    """xr, xi: [N, Cin, H, W] float32  -> (yr, yi): [N, Cout, OH, OW].

    tile1_rows / tile2_rows are dense-view rows (8 output pixels each) per tile.
    Defaults keep the pass-1 working set ~7 MiB (fits v7x's 64 MiB VMEM with
    plenty of headroom); on v5e/v6e (128 MiB) they may be raised 2-4x together
    with vmem_limit_bytes for longer DMA bursts.
    """
    C = COUT
    # TODO(synk): move im2col in-kernel (space-to-depth + shifted matmuls) to cut HBM traffic.
    ar, (N, OH, OW) = _im2col(xr)
    ai, _ = _im2col(xi)
    M = ar.shape[0]

    # ---- lane-dense tiling over M: 8 output pixels per dense row ----
    md_raw = -(-M // 8)
    per_core = -(-md_raw // NCORES)
    per_core = ((per_core + 7) // 8) * 8
    tm1 = ((min(tile1_rows, per_core) + 7) // 8) * 8
    steps = -(-per_core // tm1)                 # pass-1 steps per core
    md = NCORES * steps * tm1                   # padded dense rows
    rows = md * 8                               # padded packed rows

    # packed patches [ar|ai], folded 8 rows -> 576 lanes.
    # Zero-row padding is BN-stat-neutral: the conv has no bias, so padded rows
    # produce c == 0 and add nothing to Σc/Σc²/Σcr·ci, while inv_m uses true M.
    a = jnp.concatenate([ar, ai], axis=1)                       # [M, 2K]
    a = jnp.pad(a, ((0, rows - M), (0, 0))).reshape(md, AK)     # [md, 576]

    # fused complex-conv weight, block-diagonal over the 8 folded pixels
    wr = params["conv_wr"].reshape(C, -1).T                     # [K, C]
    wi = params["conv_wi"].reshape(C, -1).T                     # [K, C]
    wf = jnp.concatenate(
        [jnp.concatenate([wr, wi], axis=1),
         jnp.concatenate([-wi, wr], axis=1)], axis=0)           # [2K, 2C]
    wbig = jnp.kron(jnp.eye(8, dtype=jnp.float32), wf)          # [576, 128]

    # ---- pass 1: conv + global stats (per-core stats slabs -> no race on v7x) ----
    cp1 = pltpu.CompilerParams(dimension_semantics=("parallel", "arbitrary"),
                               vmem_limit_bytes=32 * 1024 * 1024)
    c_dense, stats = pl.pallas_call(
        _conv_stats_kernel,
        grid=(NCORES, steps),
        in_specs=[pl.BlockSpec((tm1, AK), lambda n, i: (n * steps + i, 0)),   # patches
                  pl.BlockSpec((AK, 128), lambda n, i: (0, 0))],              # weight (resident)
        out_specs=(pl.BlockSpec((tm1, 128), lambda n, i: (n * steps + i, 0)),  # conv out (dense)
                   pl.BlockSpec((8, 128), lambda n, i: (n, 0))),               # per-core stats slab
        out_shape=(jax.ShapeDtypeStruct((md, 128), jnp.float32),
                   jax.ShapeDtypeStruct((NCORES * 8, 128), jnp.float32)),
        compiler_params=cp1,
    )(a, wbig)

    # ---- tiny per-channel BN/whitening algebra (wrapper-side, [C]-sized) ----
    # fold per-core slabs, then fold the 8 lane-groups back to 16 packed channels
    st = stats.reshape(NCORES, 8, 128).sum(axis=0)               # [8, 128]
    s0 = st[0].reshape(8, C2).sum(axis=0)                        # [16]  [Σcr | Σci]
    s1 = st[1].reshape(8, C2).sum(axis=0)                        # [16]  [Σcr²| Σci²]
    sx = st[2].reshape(8, C2).sum(axis=0)                        # first 8 valid: Σ cr·ci

    inv_m = 1.0 / float(M)
    mr, mi = s0[:C] * inv_m, s0[C:] * inv_m
    # TODO(synk): single-pass E[x²]-E[x]² variance; use Chan's parallel combine of
    # per-tile centered moments if very large M / large means cause cancellation.
    vrr = s1[:C] * inv_m - mr * mr + BN_EPS
    vii = s1[C:] * inv_m - mi * mi + BN_EPS
    vri = sx[:C] * inv_m - mr * mi
    tau = vrr + vii
    delta = vrr * vii - vri * vri
    s_ = jnp.sqrt(delta)
    t_ = jnp.sqrt(tau + 2.0 * s_)
    rst = 1.0 / (s_ * t_)
    urr = (s_ + vii) * rst
    uii = (s_ + vrr) * rst
    uri = -vri * rst
    Wrr, Wri, Wii = params["Wrr"], params["Wri"], params["Wii"]
    zrr = Wrr * urr + Wri * uri
    zri = Wrr * uri + Wri * uii
    zir = Wri * urr + Wii * uri
    zii = Wri * uri + Wii * uii

    # per-channel 2x2 complex mix as a [2C,2C] matrix on packed [xr|xi] columns
    zmat = jnp.block([[jnp.diag(zrr), jnp.diag(zir)],
                      [jnp.diag(zri), jnp.diag(zii)]])           # [2C, 2C]
    mean_pk = jnp.concatenate([mr, mi])                          # [2C]
    b_pk = jnp.concatenate([params["Br"], params["Bi"]])         # [2C]
    beff = b_pk - mean_pk @ zmat                                 # fold centering into bias

    zbig = jnp.kron(jnp.eye(8, dtype=jnp.float32), zmat)         # [128, 128]
    beff_d = jnp.tile(beff, 8).reshape(1, 128)

    # ---- pass 2: whiten + affine + CLeakyReLU, large lane-dense tiles ----
    f = 1
    total = NCORES * steps
    for d in range(1, total + 1):                                # largest divisor fitting budget
        if total % d == 0 and tm1 * d <= tile2_rows:
            f = d
    tm2 = tm1 * f
    grid2 = md // tm2
    cp2 = pltpu.CompilerParams(dimension_semantics=("parallel",),
                               vmem_limit_bytes=32 * 1024 * 1024)
    y_dense = pl.pallas_call(
        _whiten_act_kernel,
        grid=(grid2,),
        in_specs=[pl.BlockSpec((tm2, 128), lambda i: (i, 0)),
                  pl.BlockSpec((128, 128), lambda i: (0, 0)),
                  pl.BlockSpec((1, 128), lambda i: (0, 0))],
        out_specs=pl.BlockSpec((tm2, 128), lambda i: (i, 0)),
        out_shape=jax.ShapeDtypeStruct((md, 128), jnp.float32),
        compiler_params=cp2,
    )(c_dense, zbig, beff_d)

    y_pk = y_dense.reshape(md * 8, C2)[:M]
    yr = y_pk[:, :C].reshape(N, OH, OW, C).transpose(0, 3, 1, 2)
    yi = y_pk[:, C:].reshape(N, OH, OW, C).transpose(0, 3, 1, 2)
    return yr, yi


encoder_forward_jit = jax.jit(encoder_forward,
                              static_argnames=("tile1_rows", "tile2_rows"))


# --------------------------- pure-JAX reference -------------------------------
def _ref_forward(xr, xi, params):
    def conv(x, w):
        return jax.lax.conv_general_dilated(
            x, w, window_strides=(SH, SW), padding=((PH, PH), (PW, PW)),
            dimension_numbers=("NCHW", "OIHW", "NCHW"))

    wr, wi = params["conv_wr"], params["conv_wi"]
    cr = conv(xr, wr) - conv(xi, wi)
    ci = conv(xi, wr) + conv(xr, wi)

    red = (0, 2, 3)
    mr = jnp.mean(cr, axis=red, keepdims=True)
    mi = jnp.mean(ci, axis=red, keepdims=True)
    cxr, cxi = cr - mr, ci - mi
    vrr = jnp.mean(cxr * cxr, axis=red, keepdims=True) + BN_EPS
    vri = jnp.mean(cxr * cxi, axis=red, keepdims=True)
    vii = jnp.mean(cxi * cxi, axis=red, keepdims=True) + BN_EPS
    tau = vrr + vii
    delta = vrr * vii - vri * vri
    s = jnp.sqrt(delta)
    t = jnp.sqrt(tau + 2.0 * s)
    rst = 1.0 / (s * t)
    urr, uii, uri = (s + vii) * rst, (s + vrr) * rst, -vri * rst
    vshape = (1, COUT, 1, 1)
    Wrr = params["Wrr"].reshape(vshape)
    Wri = params["Wri"].reshape(vshape)
    Wii = params["Wii"].reshape(vshape)
    zrr = Wrr * urr + Wri * uri
    zri = Wrr * uri + Wri * uii
    zir = Wri * urr + Wii * uri
    zii = Wri * uri + Wii * uii
    yr = zrr * cxr + zri * cxi + params["Br"].reshape(vshape)
    yi = zir * cxr + zii * cxi + params["Bi"].reshape(vshape)
    yr = jnp.where(yr >= 0, yr, LEAKY_SLOPE * yr)
    yi = jnp.where(yi >= 0, yi, LEAKY_SLOPE * yi)
    return yr, yi


# ------------------------------ param init ------------------------------------
def init_params(key):
    k1, k2, k3, _ = jax.random.split(key, 4)
    fanin = CIN * KH * KW
    scale = 1.0 / fanin
    # complex rayleigh init: rho ~ Rayleigh(scale), theta ~ U(-pi/2, pi/2)
    theta = jax.random.uniform(k1, (COUT, CIN, KH, KW),
                               minval=-math.pi / 2, maxval=math.pi / 2)
    u = jax.random.uniform(k2, (COUT, CIN, KH, KW), minval=1e-7, maxval=1.0)
    rho = scale * jnp.sqrt(-2.0 * jnp.log(u))
    conv_wr = (rho * jnp.cos(theta)).astype(jnp.float32)
    conv_wi = (rho * jnp.sin(theta)).astype(jnp.float32)
    return {
        "conv_wr": conv_wr,
        "conv_wi": conv_wi,
        "Wrr": jnp.ones((COUT,), jnp.float32),
        "Wri": jax.random.uniform(k3, (COUT,), minval=-0.9, maxval=0.9).astype(jnp.float32),
        "Wii": jnp.ones((COUT,), jnp.float32),
        "Br": jnp.zeros((COUT,), jnp.float32),
        "Bi": jnp.zeros((COUT,), jnp.float32),
    }


# ---------------------------------- main ---------------------------------------
if __name__ == "__main__":
    key = jax.random.PRNGKey(0)
    kp, kr, ki = jax.random.split(key, 3)
    params = init_params(kp)

    N, H, W = 2, 16, 16
    xr = jax.random.normal(kr, (N, CIN, H, W), dtype=jnp.float32)
    xi = jax.random.normal(ki, (N, CIN, H, W), dtype=jnp.float32)

    yr, yi = encoder_forward_jit(xr, xi, params)
    yr = jax.block_until_ready(yr)
    yi = jax.block_until_ready(yi)

    # sanity check against pure-JAX reference
    ryr, ryi = _ref_forward(xr, xi, params)
    assert yr.shape == ryr.shape and yi.shape == ryi.shape
    assert jnp.allclose(yr, ryr, atol=1e-3, rtol=1e-3)
    assert jnp.allclose(yi, ryi, atol=1e-3, rtol=1e-3)

    print("KERNEL_OK")
</pallas_src>

<mosaic_0001>
module attributes {stable_mosaic.version = 11 : i64} {
  func.func @_conv_stats_kernel(%arg0: i32, %arg1: i32, %arg2: memref<8x576xf32, #tpu.memory_space<vmem>>, %arg3: memref<576x128xf32, #tpu.memory_space<vmem>>, %arg4: memref<8x128xf32, #tpu.memory_space<vmem>>, %arg5: memref<8x128xf32, #tpu.memory_space<vmem>>) attributes {dimension_semantics = [#tpu.dimension_semantics<parallel>, #tpu.dimension_semantics<arbitrary>], iteration_bounds = array<i64: 2, 1>, scalar_prefetch = 0 : i64, scratch_operands = 0 : i64, tpu.core_type = #tpu.core_type<tc>, window_params = [{transform_indices = @transform_0, window_bounds = array<i64: 8, 576>}, {pipeline_mode = #tpu.pipeline_mode<synchronous>, transform_indices = @transform_1, window_bounds = array<i64: 576, 128>}, {transform_indices = @transform_2, window_bounds = array<i64: 8, 128>}, {transform_indices = @transform_3, window_bounds = array<i64: 8, 128>}]} {
    %c0 = arith.constant 0 : index
    %c0_0 = arith.constant 0 : index
    %0 = vector.load %arg2[%c0, %c0_0] : memref<8x576xf32, #tpu.memory_space<vmem>>, vector<8x576xf32>
    %c0_1 = arith.constant 0 : index
    %c0_2 = arith.constant 0 : index
    %1 = vector.load %arg3[%c0_1, %c0_2] : memref<576x128xf32, #tpu.memory_space<vmem>>, vector<576x128xf32>
    %cst = arith.constant dense<0.000000e+00> : vector<8x128xf32>
    %2 = tpu.matmul %0, %1, %cst {dimension_numbers = #tpu.dot_dimension_numbers<[1], [0], [0], [1], [0, 0, 1, 1], [], []>} : vector<8x576xf32>, vector<576x128xf32>, vector<8x128xf32> -> vector<8x128xf32>
    %c0_3 = arith.constant 0 : index
    %c0_4 = arith.constant 0 : index
    %3 = vector.load %arg4[%c0_3, %c0_4] : memref<8x128xf32, #tpu.memory_space<vmem>>, vector<8x128xf32>
    tpu.vector_store %arg4[%c0_3, %c0_4], %2 {strides = array<i32>} : memref<8x128xf32, #tpu.memory_space<vmem>>, vector<8x128xf32>,
    %c0_i32 = arith.constant 0 : i32
    %4 = arith.cmpi eq, %arg1, %c0_i32 : i32
    %5 = arith.extui %4 : i1 to i32
    %c0_i32_5 = arith.constant 0 : i32
    %6 = arith.cmpi ne, %5, %c0_i32_5 : i32
    scf.if %6 {
      %cst_19 = arith.constant 0.000000e+00 : f32
      %27 = vector.broadcast %cst_19 : f32 to vector<8x128xf32>
      %c0_20 = arith.constant 0 : index
      %c0_21 = arith.constant 0 : index
      %28 = vector.load %arg5[%c0_20, %c0_21] : memref<8x128xf32, #tpu.memory_space<vmem>>, vector<8x128xf32>
      tpu.vector_store %arg5[%c0_20, %c0_21], %27 {strides = array<i32>} : memref<8x128xf32, #tpu.memory_space<vmem>>, vector<8x128xf32>,
    } else {
    }
    %cst_6 = arith.constant dense<0.000000e+00> : vector<128xf32>
    %7 = vector.multi_reduction <add>, %2, %cst_6 [0] : vector<8x128xf32> to vector<128xf32>
    %8 = vector.shape_cast %7 : vector<128xf32> to vector<1x128xf32>
    %9 = arith.mulf %2, %2 : vector<8x128xf32>
    %cst_7 = arith.constant dense<0.000000e+00> : vector<128xf32>
    %10 = vector.multi_reduction <add>, %9, %cst_7 [0] : vector<8x128xf32> to vector<128xf32>
    %11 = vector.shape_cast %10 : vector<128xf32> to vector<1x128xf32>
    %12 = vector.extract_strided_slice %2 {offsets = [0, 8], sizes = [8, 120], strides = [1, 1]} : vector<8x128xf32> to vector<8x120xf32>
    %13 = vector.extract_strided_slice %2 {offsets = [0, 0], sizes = [8, 8], strides = [1, 1]} : vector<8x128xf32> to vector<8x8xf32>
    %14 = tpu.concatenate %12, %13 in 1 : vector<8x120xf32>, vector<8x8xf32> -> vector<8x128xf32>
    %15 = arith.mulf %2, %14 : vector<8x128xf32>
    %cst_8 = arith.constant dense<0.000000e+00> : vector<128xf32>
    %16 = vector.multi_reduction <add>, %15, %cst_8 [0] : vector<8x128xf32> to vector<128xf32>
    %17 = vector.shape_cast %16 : vector<128xf32> to vector<1x128xf32>
    %c0_9 = arith.constant 0 : index
    %c0_10 = arith.constant 0 : index
    %18 = vector.load %arg5[%c0_9, %c0_10] : memref<8x128xf32, #tpu.memory_space<vmem>>, vector<1x128xf32>
    %19 = arith.addf %18, %8 : vector<1x128xf32>
    %c0_11 = arith.constant 0 : index
    %c0_12 = arith.constant 0 : index
    %20 = vector.load %arg5[%c0_11, %c0_12] : memref<8x128xf32, #tpu.memory_space<vmem>>, vector<1x128xf32>
    tpu.vector_store %arg5[%c0_11, %c0_12], %19 {strides = array<i32>} : memref<8x128xf32, #tpu.memory_space<vmem>>, vector<1x128xf32>,
    %c1 = arith.constant 1 : index
    %c0_13 = arith.constant 0 : index
    %21 = vector.load %arg5[%c1, %c0_13] : memref<8x128xf32, #tpu.memory_space<vmem>>, vector<1x128xf32>
    %22 = arith.addf %21, %11 : vector<1x128xf32>
    %c1_14 = arith.constant 1 : index
    %c0_15 = arith.constant 0 : index
    %23 = vector.load %arg5[%c1_14, %c0_15] : memref<8x128xf32, #tpu.memory_space<vmem>>, vector<1x128xf32>
    tpu.vector_store %arg5[%c1_14, %c0_15], %22 {strides = array<i32>} : memref<8x128xf32, #tpu.memory_space<vmem>>, vector<1x128xf32>,
    %c2 = arith.constant 2 : index
    %c0_16 = arith.constant 0 : index
    %24 = vector.load %arg5[%c2, %c0_16] : memref<8x128xf32, #tpu.memory_space<vmem>>, vector<1x128xf32>
    %25 = arith.addf %24, %17 : vector<1x128xf32>
    %c2_17 = arith.constant 2 : index
    %c0_18 = arith.constant 0 : index
    %26 = vector.load %arg5[%c2_17, %c0_18] : memref<8x128xf32, #tpu.memory_space<vmem>>, vector<1x128xf32>
    tpu.vector_store %arg5[%c2_17, %c0_18], %25 {strides = array<i32>} : memref<8x128xf32, #tpu.memory_space<vmem>>, vector<1x128xf32>,
    return
  }
  func.func @transform_0(%arg0: i32, %arg1: i32) -> (i32, i32) {
    %c1_i32 = arith.constant 1 : i32
    %0 = arith.muli %arg0, %c1_i32 : i32
    %1 = arith.addi %0, %arg1 : i32
    %c0_i32 = arith.constant 0 : i32
    %c0_i32_0 = arith.constant 0 : i32
    return %1, %c0_i32 : i32, i32
  }
  func.func @transform_1(%arg0: i32, %arg1: i32) -> (i32, i32) {
    %c0_i32 = arith.constant 0 : i32
    %c0_i32_0 = arith.constant 0 : i32
    %c0_i32_1 = arith.constant 0 : i32
    return %c0_i32, %c0_i32_0 : i32, i32
  }
  func.func @transform_2(%arg0: i32, %arg1: i32) -> (i32, i32) {
    %c1_i32 = arith.constant 1 : i32
    %0 = arith.muli %arg0, %c1_i32 : i32
    %1 = arith.addi %0, %arg1 : i32
    %c0_i32 = arith.constant 0 : i32
    %c0_i32_0 = arith.constant 0 : i32
    return %1, %c0_i32 : i32, i32
  }
  func.func @transform_3(%arg0: i32, %arg1: i32) -> (i32, i32) {
    %c0_i32 = arith.constant 0 : i32
    %c0_i32_0 = arith.constant 0 : i32
    return %arg0, %c0_i32 : i32, i32
  }
}

module attributes {stable_mosaic.version = 11 : i64} {
  func.func @_whiten_act_kernel(%arg0: i32, %arg1: memref<16x128xf32, #tpu.memory_space<vmem>>, %arg2: memref<128x128xf32, #tpu.memory_space<vmem>>, %arg3: memref<1x128xf32, #tpu.memory_space<vmem>>, %arg4: memref<16x128xf32, #tpu.memory_space<vmem>>) attributes {dimension_semantics = [#tpu.dimension_semantics<parallel>], iteration_bounds = array<i64: 1>, scalar_prefetch = 0 : i64, scratch_operands = 0 : i64, tpu.core_type = #tpu.core_type<tc>, window_params = [{transform_indices = @transform_0, window_bounds = array<i64: 16, 128>}, {pipeline_mode = #tpu.pipeline_mode<synchronous>, transform_indices = @transform_1, window_bounds = array<i64: 128, 128>}, {pipeline_mode = #tpu.pipeline_mode<synchronous>, transform_indices = @transform_2, window_bounds = array<i64: 1, 128>}, {transform_indices = @transform_3, window_bounds = array<i64: 16, 128>}]} {
    %c0 = arith.constant 0 : index
    %c0_0 = arith.constant 0 : index
    %0 = vector.load %arg1[%c0, %c0_0] : memref<16x128xf32, #tpu.memory_space<vmem>>, vector<16x128xf32>
    %c0_1 = arith.constant 0 : index
    %c0_2 = arith.constant 0 : index
    %1 = vector.load %arg2[%c0_1, %c0_2] : memref<128x128xf32, #tpu.memory_space<vmem>>, vector<128x128xf32>
    %cst = arith.constant dense<0.000000e+00> : vector<16x128xf32>
    %2 = tpu.matmul %0, %1, %cst {dimension_numbers = #tpu.dot_dimension_numbers<[1], [0], [0], [1], [0, 0, 1, 1], [], []>} : vector<16x128xf32>, vector<128x128xf32>, vector<16x128xf32> -> vector<16x128xf32>
    %c0_3 = arith.constant 0 : index
    %c0_4 = arith.constant 0 : index
    %3 = vector.load %arg3[%c0_3, %c0_4] : memref<1x128xf32, #tpu.memory_space<vmem>>, vector<1x128xf32>
    %4 = vector.broadcast %3 : vector<1x128xf32> to vector<16x128xf32>
    %5 = arith.addf %2, %4 : vector<16x128xf32>
    %cst_5 = arith.constant 0.000000e+00 : f32
    %6 = vector.broadcast %cst_5 : f32 to vector<16x128xf32>
    %7 = arith.cmpf oge, %5, %6 : vector<16x128xf32>
    %cst_6 = arith.constant 0.00999999977 : f32
    %8 = vector.broadcast %cst_6 : f32 to vector<16x128xf32>
    %9 = arith.mulf %8, %5 : vector<16x128xf32>
    %10 = arith.select %7, %5, %9 : vector<16x128xi1>, vector<16x128xf32>
    %c0_7 = arith.constant 0 : index
    %c0_8 = arith.constant 0 : index
    %11 = vector.load %arg4[%c0_7, %c0_8] : memref<16x128xf32, #tpu.memory_space<vmem>>, vector<16x128xf32>
    tpu.vector_store %arg4[%c0_7, %c0_8], %10 {strides = array<i32>} : memref<16x128xf32, #tpu.memory_space<vmem>>, vector<16x128xf32>,
    return
  }
  func.func @transform_0(%arg0: i32) -> (i32, i32) {
    %c0_i32 = arith.constant 0 : i32
    %c0_i32_0 = arith.constant 0 : i32
    return %arg0, %c0_i32 : i32, i32
  }
  func.func @transform_1(%arg0: i32) -> (i32, i32) {
    %c0_i32 = arith.constant 0 : i32
    %c0_i32_0 = arith.constant 0 : i32
    %c0_i32_1 = arith.constant 0 : i32
    return %c0_i32, %c0_i32_0 : i32, i32
  }
  func.func @transform_2(%arg0: i32) -> (i32, i32) {
    %c0_i32 = arith.constant 0 : i32
    %c0_i32_0 = arith.constant 0 : i32
    %c0_i32_1 = arith.constant 0 : i32
    return %c0_i32, %c0_i32_0 : i32, i32
  }
  func.func @transform_3(%arg0: i32) -> (i32, i32) {
    %c0_i32 = arith.constant 0 : i32
    %c0_i32_0 = arith.constant 0 : i32
    return %arg0, %c0_i32 : i32, i32
  }
}

</mosaic_0001>

<llo_original>
// kernel: squeeze.3
$region0: #{squeeze.3}
  %s0 = inlined_call_operand.vmem [shape: f32[128], index: 0, kind: input, shape index: {}]
  %s1 = inlined_call_operand.vmem [shape: f32[8,16], index: 1, kind: output, shape index: {}]
  $region1: #{squeeze.3} parent=0
    #allocation0 [shape = 'u8[4096]{0}', space=vmem, size = 0x1000, scoped, tag = 'scoped mem for input reshape']
    %s3 = sshll.u32 1, 1
    %s4 = ssub.s32 %s3, 1
    %v5 = vld [vmem:[%s0] sm:%s4]
    %6 = vst [vmem:[#allocation0] sm:%s4] %v5
    %v7 = vld [vmem:[#allocation0] sm:$0x1]
    %vm8 = vcmask 130048
    %9 = vst.msk [vmem:[%s1] sm:$0x1] %vm8, %v7
    %v10 = vld [vmem:[#allocation0] sm:$0x1]
    %11 = vrot.lane.b32.xlu0 %v10, 112
    %v12 = vpop.permute.xlu0 %11
    %vm13 = vcmask 130048
    %s14 = scalar_lea.vmem %s1, 1
    %15 = vst.msk [vmem:[%s14] sm:$0x1] %vm13, %v12
    %v16 = vld [vmem:[#allocation0] sm:$0x1]
    %17 = vrot.lane.b32.xlu0 %v16, 96
    %v18 = vpop.permute.xlu0 %17
    %vm19 = vcmask 130048
    %s20 = scalar_lea.vmem %s1, 2
    %21 = vst.msk [vmem:[%s20] sm:$0x1] %vm19, %v18
    %v22 = vld [vmem:[#allocation0] sm:$0x1]
    %23 = vrot.lane.b32.xlu0 %v22, 80
    %v24 = vpop.permute.xlu0 %23
    %vm25 = vcmask 130048
    %s26 = scalar_lea.vmem %s1, 3
    %27 = vst.msk [vmem:[%s26] sm:$0x1] %vm25, %v24
    %v28 = vld [vmem:[#allocation0] sm:$0x1]
    %29 = vrot.lane.b32.xlu0 %v28, 64
    %v30 = vpop.permute.xlu0 %29
    %vm31 = vcmask 130048
    %s32 = scalar_lea.vmem %s1, 4
    %33 = vst.msk [vmem:[%s32] sm:$0x1] %vm31, %v30
    %v34 = vld [vmem:[#allocation0] sm:$0x1]
    %35 = vrot.lane.b32.xlu0 %v34, 48
    %v36 = vpop.permute.xlu0 %35
    %vm37 = vcmask 130048
    %s38 = scalar_lea.vmem %s1, 5
    %39 = vst.msk [vmem:[%s38] sm:$0x1] %vm37, %v36
    %v40 = vld [vmem:[#allocation0] sm:$0x1]
    %41 = vrot.lane.b32.xlu0 %v40, 32
    %v42 = vpop.permute.xlu0 %41
    %vm43 = vcmask 130048
    %s44 = scalar_lea.vmem %s1, 6
    %45 = vst.msk [vmem:[%s44] sm:$0x1] %vm43, %v42
    %v46 = vld [vmem:[#allocation0] sm:$0x1]
    %47 = vrot.lane.b32.xlu0 %v46, 16
    %v48 = vpop.permute.xlu0 %47
    %vm49 = vcmask 130048
    %s50 = scalar_lea.vmem %s1, 7
    %51 = vst.msk [vmem:[%s50] sm:$0x1] %vm49, %v48

// kernel: tile.8
$region0: #{tile.8}
  #allocation0 [shape = 's32[1]{0}', space=sflag, size = 0x4, scoped, tag = 'scoped memory for tile.8']
  %s0 = inlined_call_operand.vmem [shape: f32[16], index: 0, kind: input, shape index: {}]
  %s1 = inlined_call_operand.vmem [shape: f32[8,16], index: 1, kind: output, shape index: {}]
  // Predicated region
  $region2: #{tile.8} parent=0 // pred_check
    _
  $region3: #{tile.8} parent=0 // pred_check_branch
    %3 = sbr.rel (0) target = $region5
  $region4: #{tile.8} parent=0 // pred_region
    _
  $region5: #{tile.8} parent=0 // pred_fallthru
    _
  %v4 = vld [vmem:[%s0] ss:$0 sm:$0xff]
  %5 = vst [vmem:[%s1] sm:$0xff] %v4

// kernel: tile.9
$region0: #{tile.9}
  %s0 = inlined_call_operand.vmem [shape: f32[8,16], index: 0, kind: input, shape index: {}]
  %s1 = inlined_call_operand.vmem [shape: f32[1,128], index: 1, kind: output, shape index: {}]
  $region1: #{tile.9} parent=0
    #allocation0 [shape = 'u8[4096]{0}', space=vmem, size = 0x1000, scoped, tag = 'scoped mem for output reshape']
    %v2 = vld [vmem:[%s0] sm:$0x1]
    %vm3 = vcmask 130048
    %4 = vst.msk [vmem:[#allocation0] sm:$0x1] %vm3, %v2
    %s5 = scalar_lea.vmem %s0, 7
    %v6 = vld [vmem:[%s5] sm:$0x1]
    %7 = vrot.lane.b32.xlu0 %v6, 112
    %v8 = vpop.permute.xlu0 %7
    %vm9 = vcmask 1048448
    %10 = vst.msk [vmem:[#allocation0] sm:$0x1] %vm9, %v8
    %s11 = scalar_lea.vmem %s0, 6
    %v12 = vld [vmem:[%s11] sm:$0x1]
    %13 = vrot.lane.b32.xlu0 %v12, 96
    %v14 = vpop.permute.xlu0 %13
    %vm15 = vcmask 917248
    %16 = vst.msk [vmem:[#allocation0] sm:$0x1] %vm15, %v14
    %s17 = scalar_lea.vmem %s0, 5
    %v18 = vld [vmem:[%s17] sm:$0x1]
    %19 = vrot.lane.b32.xlu0 %v18, 80
    %v20 = vpop.permute.xlu0 %19
    %vm21 = vcmask 786048
    %22 = vst.msk [vmem:[#allocation0] sm:$0x1] %vm21, %v20
    %s23 = scalar_lea.vmem %s0, 4
    %v24 = vld [vmem:[%s23] sm:$0x1]
    %25 = vrot.lane.b32.xlu0 %v24, 64
    %v26 = vpop.permute.xlu0 %25
    %vm27 = vcmask 654848
    %28 = vst.msk [vmem:[#allocation0] sm:$0x1] %vm27, %v26
    %s29 = scalar_lea.vmem %s0, 3
    %v30 = vld [vmem:[%s29] sm:$0x1]
    %31 = vrot.lane.b32.xlu0 %v30, 48
    %v32 = vpop.permute.xlu0 %31
    %vm33 = vcmask 523648
    %34 = vst.msk [vmem:[#allocation0] sm:$0x1] %vm33, %v32
    %s35 = scalar_lea.vmem %s0, 2
    %v36 = vld [vmem:[%s35] sm:$0x1]
    %37 = vrot.lane.b32.xlu0 %v36, 32
    %v38 = vpop.permute.xlu0 %37
    %vm39 = vcmask 392448
    %40 = vst.msk [vmem:[#allocation0] sm:$0x1] %vm39, %v38
    %s41 = scalar_lea.vmem %s0, 1
    %v42 = vld [vmem:[%s41] sm:$0x1]
    %43 = vrot.lane.b32.xlu0 %v42, 16
    %v44 = vpop.permute.xlu0 %43
    %vm45 = vcmask 261248
    %46 = vst.msk [vmem:[#allocation0] sm:$0x1] %vm45, %v44
    %s48 = sshll.u32 1, 1
    %s49 = ssub.s32 %s48, 1
    %v51 = vld [vmem:[#allocation0] sm:%s49]
    %s52 = sshll.u32 1, 1
    %s53 = ssub.s32 %s52, 1
    %54 = vst [vmem:[%s1] sm:%s53] %v51

// kernel: encoder_forward.2
$region0: #{encoder_forward.2}
  #allocation0 [shape = 'u32[]', space=smem, size = 0x4, offset = 0x4, fixed_abs, tag = 'smem constant byte address 0x4 - core index']
  #allocation1 [shape = 'u32[144,128]{1,0:T(1,128)}', space=vmem, size = 0x12000, scoped, tag = 'internal scratch']
  %s0 = inlined_call_operand.vmem [shape: f32[16,576], index: 0, kind: input, shape index: {}]
  %s1 = inlined_call_operand.vmem [shape: f32[576,128], index: 1, kind: input, shape index: {}]
  %s2 = inlined_call_operand.vmem [shape: f32[16,128], index: 2, kind: output, shape index: {0}]
  %s3 = inlined_call_operand.vmem [shape: f32[16,128], index: 3, kind: output, shape index: {1}]
  %4 = xla_tuple %s2, %s3
  %s5 = sld [smem:[#allocation0]]
  $region53: #{encoder_forward.2} parent=0
    _
  %s7 = ssub.s32 1, %s5
  %s8 = scalar_select 0, %s7, %s5
  loop: start=0, step=1, limit=4
  $region2: #{encoder_forward.2} parent=0 // loop_pre_header
    _
  $region3: #{encoder_forward.2} parent=0 // loop_header
    %s10 = sphi 0, %s14
    %p11 = scmp.ge.s32.totalorder %s10, 4
    %s17 = sphi 0, %s29
    %s18 = sphi 0, %s25
    %s19 = sphi 0, %s17
    %s20 = sphi 0, %s18
    %s21 = sphi 0, %s19
    %s22 = sphi 0, %s20
    %s34 = sphi 0, %s36
    %s37 = sphi 0, %s34
    %s38 = sphi 0, %s37
    %s54 = sphi 0, %s38
    %s58 = sphi 0, %s58
    %s60 = sphi 0, %s58
    %s61 = sphi 0, %s60
    %s75 = sphi 0, %s61
    %s83 = sphi 0, %s85
    %s86 = sphi 0, %s83
    %s87 = sphi 0, %s86
    %s103 = sphi 0, %s87
    %s109 = sphi 0, %s111
    %s112 = sphi 0, %s109
    %s113 = sphi 0, %s112
    %s129 = sphi 0, %s113
  $region4: #{encoder_forward.2} parent=0 // loop_header_branch
    %13 = sbr.rel (%p11) target = $region8
  $region5: #{encoder_forward.2} parent=0 // loop_body
    %s15 = ssub.s32 %s10, 1
    %s16 = ssub.s32 %s10, 2
    %s23 = sadd.s32 1, %s18
    %p24 = scmp.ge.s32.totalorder %s23, 1
    %s25 = scalar_select %p24, 0, %s23
    %s26 = sadd.s32 1, %s17
    %s27 = scalar_select %p24, %s26, %s17
    %p28 = scmp.ge.s32.totalorder %s27, 2
    %s29 = scalar_select %p28, 0, %s27
    %s30 = sadd.s32 %s17, %s18
    %s31 = sadd.s32 %s29, %s25
    %s32 = ssub.s32 %s30, %s31
    %p33 = scmp.eq.s32.totalorder %s32, 0
    %s35 = sadd.s32 %s34, 1
    %s36 = scalar_select %p33, %s34, %s35
    %p39 = pneg %p33
    %p40 = scmp.eq.s32.totalorder %s10, 1
    %p41 = por %p39, %p40
    %p42 = scmp.ne.s32.totalorder %s34, %s37
    %p43 = scmp.eq.s32.totalorder %s10, 0
    %p44 = por %p42, %p43
    %p45 = scmp.ne.s32.totalorder %s34, %s37
    %p46 = scmp.eq.s32.totalorder %s15, 1
    %p47 = por %p45, %p46
    %p48 = scmp.ne.s32.totalorder %s37, %s38
    %p49 = scmp.eq.s32.totalorder %s15, 0
    %p50 = por %p48, %p49
    %p51 = scmp.ne.s32.totalorder %s37, %s38
    %p52 = scmp.eq.s32.totalorder %s16, 1
    %p53 = por %p51, %p52
    %p55 = scmp.ne.s32.totalorder %s38, %s54
    %p56 = scmp.eq.s32.totalorder %s16, 0
    %p57 = por %p55, %p56
    %s59 = sadd.s32 %s58, 1
    %p62 = scmp.eq.s32.totalorder %s10, 1
    %p63 = scmp.ne.s32.totalorder %s58, %s60
    %p64 = scmp.eq.s32.totalorder %s10, 0
    %p65 = por %p63, %p64
    %p66 = scmp.ne.s32.totalorder %s58, %s60
    %p67 = scmp.eq.s32.totalorder %s15, 1
    %p68 = por %p66, %p67
    %p69 = scmp.ne.s32.totalorder %s60, %s61
    %p70 = scmp.eq.s32.totalorder %s15, 0
    %p71 = por %p69, %p70
    %p72 = scmp.ne.s32.totalorder %s60, %s61
    %p73 = scmp.eq.s32.totalorder %s16, 1
    %p74 = por %p72, %p73
    %p76 = scmp.ne.s32.totalorder %s61, %s75
    %p77 = scmp.eq.s32.totalorder %s16, 0
    %p78 = por %p76, %p77
    %s79 = sadd.s32 %s17, %s18
    %s80 = sadd.s32 %s29, %s25
    %s81 = ssub.s32 %s79, %s80
    %p82 = scmp.eq.s32.totalorder %s81, 0
    %s84 = sadd.s32 %s83, 1
    %s85 = scalar_select %p82, %s83, %s84
    %p88 = pneg %p82
    %p89 = scmp.eq.s32.totalorder %s10, 1
    %p90 = por %p88, %p89
    %p91 = scmp.ne.s32.totalorder %s83, %s86
    %p92 = scmp.eq.s32.totalorder %s10, 0
    %p93 = por %p91, %p92
    %p94 = scmp.ne.s32.totalorder %s83, %s86
    %p95 = scmp.eq.s32.totalorder %s15, 1
    %p96 = por %p94, %p95
    %p97 = scmp.ne.s32.totalorder %s86, %s87
    %p98 = scmp.eq.s32.totalorder %s15, 0
    %p99 = por %p97, %p98
    %p100 = scmp.ne.s32.totalorder %s86, %s87
    %p101 = scmp.eq.s32.totalorder %s16, 1
    %p102 = por %p100, %p101
    %p104 = scmp.ne.s32.totalorder %s87, %s103
    %p105 = scmp.eq.s32.totalorder %s16, 0
    %p106 = por %p104, %p105
    %s107 = ssub.s32 %s17, %s29
    %p108 = scmp.eq.s32.totalorder %s107, 0
    %s110 = sadd.s32 %s109, 1
    %s111 = scalar_select %p108, %s109, %s110
    %p114 = pneg %p108
    %p115 = scmp.eq.s32.totalorder %s10, 1
    %p116 = por %p114, %p115
    %p117 = scmp.ne.s32.totalorder %s109, %s112
    %p118 = scmp.eq.s32.totalorder %s10, 0
    %p119 = por %p117, %p118
    %p120 = scmp.ne.s32.totalorder %s109, %s112
    %p121 = scmp.eq.s32.totalorder %s15, 1
    %p122 = por %p120, %p121
    %p123 = scmp.ne.s32.totalorder %s112, %s113
    %p124 = scmp.eq.s32.totalorder %s15, 0
    %p125 = por %p123, %p124
    %p126 = scmp.ne.s32.totalorder %s112, %s113
    %p127 = scmp.eq.s32.totalorder %s16, 1
    %p128 = por %p126, %p127
    %p130 = scmp.ne.s32.totalorder %s113, %s129
    %p131 = scmp.eq.s32.totalorder %s16, 0
    %p132 = por %p130, %p131
    %p133 = scmp.le.s32.totalorder 1, %s10
    %p134 = scmp.lt.s32.totalorder %s10, 3
    %p135 = pnand %p133, %p134
    %p136 = pneg %p135
    // Predicated region
    $region9: #{encoder_forward.2} parent=5 // pred_check
      _
    $region10: #{encoder_forward.2} parent=5 // pred_check_branch
      %138 = sbr.rel (%p135) target = $region12
    $region11: #{encoder_forward.2} parent=5 // pred_region
      %s139 = ssub.s32 %s10, 1
      // Predicated region
      $region13: #{encoder_forward.2} parent=11 // pred_check
        %p140 = pneg %p71
      $region14: #{encoder_forward.2} parent=11 // pred_check_branch
        %142 = sbr.rel (%p140) target = $region16
      $region15: #{encoder_forward.2} parent=11 // pred_region
        _
      $region16: #{encoder_forward.2} parent=11 // pred_fallthru
        _
    $region12: #{encoder_forward.2} parent=5 // pred_fallthru
      _
    %p143 = scmp.lt.s32.totalorder %s10, 2
    // Predicated region
    $region17: #{encoder_forward.2} parent=5 // pred_check
      %p144 = pneg %p143
    $region18: #{encoder_forward.2} parent=5 // pred_check_branch
      %146 = sbr.rel (%p144) target = $region20
    $region19: #{encoder_forward.2} parent=5 // pred_region
      // Predicated region
      $region21: #{encoder_forward.2} parent=19 // pred_check
        %p147 = pneg %p44
      $region22: #{encoder_forward.2} parent=19 // pred_check_branch
        %149 = sbr.rel (%p147) target = $region24
      $region23: #{encoder_forward.2} parent=19 // pred_region
        %s150 = sadd.s32 %s17, %s18
        %p151 = scmp.lt.s32.totalorder %s150, 1
        %s152 = scalar_select %p151, %s150, 1
        %s153 = smul.addr %s152, 5
        %s154 = smul.addr %s153, 8
        %s155 = scalar_lea.vmem %s0, %s154
        %s156 = sadd.s32 %s17, %s18
      $region24: #{encoder_forward.2} parent=19 // pred_fallthru
        _
    $region20: #{encoder_forward.2} parent=5 // pred_fallthru
      _
    %p157 = scmp.le.s32.totalorder 1, %s10
    %p158 = scmp.lt.s32.totalorder %s10, 3
    %p159 = pnand %p157, %p158
    %p160 = pneg %p159
    // Predicated region
    $region25: #{encoder_forward.2} parent=5 // pred_check
      _
    $region26: #{encoder_forward.2} parent=5 // pred_check_branch
      %162 = sbr.rel (%p159) target = $region28
    $region27: #{encoder_forward.2} parent=5 // pred_region
      %s163 = ssub.s32 %s10, 1
      %s164 = sadd.s32 %s19, %s20
      %p165 = scmp.lt.s32.totalorder %s164, 1
      %s166 = scalar_select %p165, %s164, 1
      %s167 = smul.addr %s166, 5
      %s168 = smul.addr %s167, 8
      %s169 = scalar_lea.vmem %s0, %s168
      %p170 = pneg %p50
      %p171 = pneg %p47
      %p172 = pneg %p71
      %p173 = pneg %p68
      %p174 = pneg %p99
      %p175 = pneg %p96
      %s176 = sadd.s32 %s19, %s20
      %p177 = scmp.lt.s32.totalorder %s176, 1
      %s178 = scalar_select %p177, %s176, 1
      %s179 = smul.addr %s178, 8
      %s180 = scalar_lea.vmem %s2, %s179
      %p181 = pneg %p125
      %p182 = pneg %p122
      %p183 = scmp.lt.s32.totalorder %s19, 1
      %s184 = scalar_select %p183, %s19, 1
      %s185 = smul.addr %s184, 8
      %s186 = scalar_lea.vmem %s3, %s185
      %s187 = sadd.s32 %s19, %s20
      %p188 = scmp.lt.s32.totalorder %s187, 1
      %s189 = scalar_select %p188, %s187, 1
      %s190 = smul.addr %s189, 5
      %s191 = smul.addr %s190, 8
      %s192 = scalar_lea.vmem %s0, %s191
      %s193 = sadd.s32 %s19, %s20
      %s194 = sadd.s32 %s19, %s20
      %p195 = scmp.lt.s32.totalorder %s194, 1
      %s196 = scalar_select %p195, %s194, 1
      %s197 = smul.addr %s196, 8
      %s198 = scalar_lea.vmem %s2, %s197
      %s199 = sadd.s32 %s19, %s20
      %p200 = scmp.lt.s32.totalorder %s19, 1
      %s201 = scalar_select %p200, %s19, 1
      %s202 = smul.addr %s201, 8
      %s203 = scalar_lea.vmem %s3, %s202
      %v204 = vld [vmem:[%s192] sm:$0xff]
      %v205 = vld [vmem:[%s192 + $0x8] sm:$0xff]
      %v206 = vld [vmem:[%s192 + $0x10] sm:$0xff]
      %v207 = vld [vmem:[%s192 + $0x18] sm:$0xff]
      %v208 = vld [vmem:[%s192 + $0x20] sm:$0xff]
      %v209 = vld [vmem:[%s1] sm:$0xff]
      %v210 = vld [vmem:[%s1 + $0x8] sm:$0xff]
      %v211 = vld [vmem:[%s1 + $0x10] sm:$0xff]
      %v212 = vld [vmem:[%s1 + $0x18] sm:$0xff]
      %v213 = vld [vmem:[%s1 + $0x20] sm:$0xff]
      %v214 = vld [vmem:[%s1 + $0x28] sm:$0xff]
      %v215 = vld [vmem:[%s1 + $0x30] sm:$0xff]
      %v216 = vld [vmem:[%s1 + $0x38] sm:$0xff]
      %v217 = vld [vmem:[%s1 + $0x40] sm:$0xff]
      %v218 = vld [vmem:[%s1 + $0x48] sm:$0xff]
      %v219 = vld [vmem:[%s1 + $0x50] sm:$0xff]
      %v220 = vld [vmem:[%s1 + $0x58] sm:$0xff]
      %v221 = vld [vmem:[%s1 + $0x60] sm:$0xff]
      %v222 = vld [vmem:[%s1 + $0x68] sm:$0xff]
      %v223 = vld [vmem:[%s1 + $0x70] sm:$0xff]
      %v224 = vld [vmem:[%s1 + $0x78] sm:$0xff]
      %v225 = vld [vmem:[%s1 + $0x80] sm:$0xff]
      %v226 = vld [vmem:[%s1 + $0x88] sm:$0xff]
      %v227 = vld [vmem:[%s1 + $0x90] sm:$0xff]
      %v228 = vld [vmem:[%s1 + $0x98] sm:$0xff]
      %v229 = vld [vmem:[%s1 + $0xa0] sm:$0xff]
      %v230 = vld [vmem:[%s1 + $0xa8] sm:$0xff]
      %v231 = vld [vmem:[%s1 + $0xb0] sm:$0xff]
      %v232 = vld [vmem:[%s1 + $0xb8] sm:$0xff]
      %v233 = vld [vmem:[%s1 + $0xc0] sm:$0xff]
      %v234 = vld [vmem:[%s1 + $0xc8] sm:$0xff]
      %v235 = vld [vmem:[%s1 + $0xd0] sm:$0xff]
      %v236 = vld [vmem:[%s1 + $0xd8] sm:$0xff]
      %v237 = vld [vmem:[%s1 + $0xe0] sm:$0xff]
      %v238 = vld [vmem:[%s1 + $0xe8] sm:$0xff]
      %v239 = vld [vmem:[%s1 + $0xf0] sm:$0xff]
      %v240 = vld [vmem:[%s1 + $0xf8] sm:$0xff]
      %v241 = vld [vmem:[%s1 + $0x100] sm:$0xff]
      %v242 = vld [vmem:[%s1 + $0x108] sm:$0xff]
      %v243 = vld [vmem:[%s1 + $0x110] sm:$0xff]
      %v244 = vld [vmem:[%s1 + $0x118] sm:$0xff]
      %v245 = vld [vmem:[%s1 + $0x120] sm:$0xff]
      %v246 = vld [vmem:[%s1 + $0x128] sm:$0xff]
      %v247 = vld [vmem:[%s1 + $0x130] sm:$0xff]
      %v248 = vld [vmem:[%s1 + $0x138] sm:$0xff]
      %v249 = vld [vmem:[%s1 + $0x140] sm:$0xff]
      %v250 = vld [vmem:[%s1 + $0x148] sm:$0xff]
      %v251 = vld [vmem:[%s1 + $0x150] sm:$0xff]
      %v252 = vld [vmem:[%s1 + $0x158] sm:$0xff]
      %v253 = vld [vmem:[%s1 + $0x160] sm:$0xff]
      %v254 = vld [vmem:[%s1 + $0x168] sm:$0xff]
      %v255 = vld [vmem:[%s1 + $0x170] sm:$0xff]
      %v256 = vld [vmem:[%s1 + $0x178] sm:$0xff]
      %v257 = vld [vmem:[%s1 + $0x180] sm:$0xff]
      %v258 = vld [vmem:[%s1 + $0x188] sm:$0xff]
      %v259 = vld [vmem:[%s1 + $0x190] sm:$0xff]
      %v260 = vld [vmem:[%s1 + $0x198] sm:$0xff]
      %v261 = vld [vmem:[%s1 + $0x1a0] sm:$0xff]
      %v262 = vld [vmem:[%s1 + $0x1a8] sm:$0xff]
      %v263 = vld [vmem:[%s1 + $0x1b0] sm:$0xff]
      %v264 = vld [vmem:[%s1 + $0x1b8] sm:$0xff]
      %v265 = vld [vmem:[%s1 + $0x1c0] sm:$0xff]
      %v266 = vld [vmem:[%s1 + $0x1c8] sm:$0xff]
      %v267 = vld [vmem:[%s1 + $0x1d0] sm:$0xff]
      %v268 = vld [vmem:[%s1 + $0x1d8] sm:$0xff]
      %v269 = vld [vmem:[%s1 + $0x1e0] sm:$0xff]
      %v270 = vld [vmem:[%s1 + $0x1e8] sm:$0xff]
      %v271 = vld [vmem:[%s1 + $0x1f0] sm:$0xff]
      %v272 = vld [vmem:[%s1 + $0x1f8] sm:$0xff]
      %v273 = vld [vmem:[%s1 + $0x200] sm:$0xff]
      %v274 = vld [vmem:[%s1 + $0x208] sm:$0xff]
      %v275 = vld [vmem:[%s1 + $0x210] sm:$0xff]
      %v276 = vld [vmem:[%s1 + $0x218] sm:$0xff]
      %v277 = vld [vmem:[%s1 + $0x220] sm:$0xff]
      %v278 = vld [vmem:[%s1 + $0x228] sm:$0xff]
      %v279 = vld [vmem:[%s1 + $0x230] sm:$0xff]
      %v280 = vld [vmem:[%s1 + $0x238] sm:$0xff]
      %vm281 = vcmask 523264
      %v283 = vsel %vm281, %v208, 0
      %285 = vmatprep.subr.mxu0 0.0
      %286 = vmatpush1.msra.mxu0 %v224
      %287 = vmatprep.subr.mxu0 0.0
      %288 = vmatpush1.msra.mxu0 %v223
      %289 = vmatprep.subr.mxu0 0.0
      %290 = vmatpush1.msra.mxu0 %v222
      %291 = vmatprep.subr.mxu0 0.0
      %292 = vmatpush1.msra.mxu0 %v221
      %293 = vmatprep.subr.mxu0 0.0
      %294 = vmatpush1.msra.mxu0 %v220
      %295 = vmatprep.subr.mxu0 0.0
      %296 = vmatpush1.msra.mxu0 %v219
      %297 = vmatprep.subr.mxu0 0.0
      %298 = vmatpush1.msra.mxu0 %v218
      %299 = vmatprep.subr.mxu0 0.0
      %300 = vmatpush1.msra.mxu0 %v217
      %301 = vmatprep.subr.mxu0 0.0
      %302 = vmatpush1.msra.mxu0 %v216
      %303 = vmatprep.subr.mxu0 0.0
      %304 = vmatpush1.msra.mxu0 %v215
      %305 = vmatprep.subr.mxu0 0.0
      %306 = vmatpush1.msra.mxu0 %v214
      %307 = vmatprep.subr.mxu0 0.0
      %308 = vmatpush1.msra.mxu0 %v213
      %309 = vmatprep.subr.mxu0 0.0
      %310 = vmatpush1.msra.mxu0 %v212
      %311 = vmatprep.subr.mxu0 0.0
      %312 = vmatpush1.msra.mxu0 %v211
      %313 = vmatprep.subr.mxu0 0.0
      %314 = vmatpush1.msra.mxu0 %v210
      %315 = vmatprep.subr.mxu0 0.0
      %316 = vmatpush1.msra.mxu0 %v209
      %317 = vmatprep.subr.mxu0 0.0
      %318 = vmatpush2.msra.mxu0 %v240
      %319 = vmatprep.subr.mxu0 0.0
      %320 = vmatpush2.msra.mxu0 %v239
      %321 = vmatprep.subr.mxu0 0.0
      %322 = vmatpush2.msra.mxu0 %v238
      %323 = vmatprep.subr.mxu0 0.0
      %324 = vmatpush2.msra.mxu0 %v237
      %325 = vmatprep.subr.mxu0 0.0
      %326 = vmatpush2.msra.mxu0 %v236
      %327 = vmatprep.subr.mxu0 0.0
      %328 = vmatpush2.msra.mxu0 %v235
      %329 = vmatprep.subr.mxu0 0.0
      %330 = vmatpush2.msra.mxu0 %v234
      %331 = vmatprep.subr.mxu0 0.0
      %332 = vmatpush2.msra.mxu0 %v233
      %333 = vmatprep.subr.mxu0 0.0
      %334 = vmatpush2.msra.mxu0 %v232
      %335 = vmatprep.subr.mxu0 0.0
      %336 = vmatpush2.msra.mxu0 %v231
      %337 = vmatprep.subr.mxu0 0.0
      %338 = vmatpush2.msra.mxu0 %v230
      %339 = vmatprep.subr.mxu0 0.0
      %340 = vmatpush2.msra.mxu0 %v229
      %341 = vmatprep.subr.mxu0 0.0
      %342 = vmatpush2.msra.mxu0 %v228
      %343 = vmatprep.subr.mxu0 0.0
      %344 = vmatpush2.msra.mxu0 %v227
      %345 = vmatprep.subr.mxu0 0.0
      %346 = vmatpush2.msra.mxu0 %v226
      %347 = vmatprep.subr.mxu0 0.0
      %348 = vmatpush2.msra.mxu0 %v225
      %349 = vmatprep.mubr.f32.mxu0 %v205
      %350 = vmatmul.mubr.f32.gmra.mxu0 %v204
      %v351 = vpop.f32.mrf.mxu0
      %v352 = vadd.f32 0.0, %v351
      %v353 = vpop.f32.mrf.mxu0
      %354 = vdwg.mxu0
      %355 = vmatprep.subr.mxu0 0.0
      %356 = vmatpush1.msra.mxu0 %v256
      %357 = vmatprep.subr.mxu0 0.0
      %358 = vmatpush1.msra.mxu0 %v255
      %359 = vmatprep.subr.mxu0 0.0
      %360 = vmatpush1.msra.mxu0 %v254
      %361 = vmatprep.subr.mxu0 0.0
      %362 = vmatpush1.msra.mxu0 %v253
      %363 = vmatprep.subr.mxu0 0.0
      %364 = vmatpush1.msra.mxu0 %v252
      %365 = vmatprep.subr.mxu0 0.0
      %366 = vmatpush1.msra.mxu0 %v251
      %367 = vmatprep.subr.mxu0 0.0
      %368 = vmatpush1.msra.mxu0 %v250
      %369 = vmatprep.subr.mxu0 0.0
      %370 = vmatpush1.msra.mxu0 %v249
      %371 = vmatprep.subr.mxu0 0.0
      %372 = vmatpush1.msra.mxu0 %v248
      %373 = vmatprep.subr.mxu0 0.0
      %374 = vmatpush1.msra.mxu0 %v247
      %375 = vmatprep.subr.mxu0 0.0
      %376 = vmatpush1.msra.mxu0 %v246
      %377 = vmatprep.subr.mxu0 0.0
      %378 = vmatpush1.msra.mxu0 %v245
      %379 = vmatprep.subr.mxu0 0.0
      %380 = vmatpush1.msra.mxu0 %v244
      %381 = vmatprep.subr.mxu0 0.0
      %382 = vmatpush1.msra.mxu0 %v243
      %383 = vmatprep.subr.mxu0 0.0
      %384 = vmatpush1.msra.mxu0 %v242
      %385 = vmatprep.subr.mxu0 0.0
      %386 = vmatpush1.msra.mxu0 %v241
      %387 = vmatprep.subr.mxu0 0.0
      %388 = vmatpush2.msra.mxu0 %v272
      %389 = vmatprep.subr.mxu0 0.0
      %390 = vmatpush2.msra.mxu0 %v271
      %391 = vmatprep.subr.mxu0 0.0
      %392 = vmatpush2.msra.mxu0 %v270
      %393 = vmatprep.subr.mxu0 0.0
      %394 = vmatpush2.msra.mxu0 %v269
      %395 = vmatprep.subr.mxu0 0.0
      %396 = vmatpush2.msra.mxu0 %v268
      %397 = vmatprep.subr.mxu0 0.0
      %398 = vmatpush2.msra.mxu0 %v267
      %399 = vmatprep.subr.mxu0 0.0
      %400 = vmatpush2.msra.mxu0 %v266
      %401 = vmatprep.subr.mxu0 0.0
      %402 = vmatpush2.msra.mxu0 %v265
      %403 = vmatprep.subr.mxu0 0.0
      %404 = vmatpush2.msra.mxu0 %v264
      %405 = vmatprep.subr.mxu0 0.0
      %406 = vmatpush2.msra.mxu0 %v263
      %407 = vmatprep.subr.mxu0 0.0
      %408 = vmatpush2.msra.mxu0 %v262
      %409 = vmatprep.subr.mxu0 0.0
      %410 = vmatpush2.msra.mxu0 %v261
      %411 = vmatprep.subr.mxu0 0.0
      %412 = vmatpush2.msra.mxu0 %v260
      %413 = vmatprep.subr.mxu0 0.0
      %414 = vmatpush2.msra.mxu0 %v259
      %415 = vmatprep.subr.mxu0 0.0
      %416 = vmatpush2.msra.mxu0 %v258
      %417 = vmatprep.subr.mxu0 0.0
      %418 = vmatpush2.msra.mxu0 %v257
      %419 = vmatprep.mubr.f32.mxu0 %v207
      %420 = vmatmul.mubr.f32.gmra.mxu0 %v206
      %v421 = vpop.f32.mrf.mxu0
      %v422 = vadd.f32 %v352, %v421
      %v423 = vpop.f32.mrf.mxu0
      %424 = vdwg.mxu0
      %425 = vmatprep.subr.mxu0 0.0
      %426 = vmatpush1.msra.mxu0 0.0
      %427 = vmatprep.subr.mxu0 0.0
      %428 = vmatpush1.msra.mxu0 0.0
      %429 = vmatprep.subr.mxu0 0.0
      %430 = vmatpush1.msra.mxu0 0.0
      %431 = vmatprep.subr.mxu0 0.0
      %432 = vmatpush1.msra.mxu0 0.0
      %433 = vmatprep.subr.mxu0 0.0
      %434 = vmatpush1.msra.mxu0 0.0
      %435 = vmatprep.subr.mxu0 0.0
      %436 = vmatpush1.msra.mxu0 0.0
      %437 = vmatprep.subr.mxu0 0.0
      %438 = vmatpush1.msra.mxu0 0.0
      %439 = vmatprep.subr.mxu0 0.0
      %440 = vmatpush1.msra.mxu0 0.0
      %441 = vmatprep.subr.mxu0 0.0
      %442 = vmatpush1.msra.mxu0 %v280
      %443 = vmatprep.subr.mxu0 0.0
      %444 = vmatpush1.msra.mxu0 %v279
      %445 = vmatprep.subr.mxu0 0.0
      %446 = vmatpush1.msra.mxu0 %v278
      %447 = vmatprep.subr.mxu0 0.0
      %448 = vmatpush1.msra.mxu0 %v277
      %449 = vmatprep.subr.mxu0 0.0
      %450 = vmatpush1.msra.mxu0 %v276
      %451 = vmatprep.subr.mxu0 0.0
      %452 = vmatpush1.msra.mxu0 %v275
      %453 = vmatprep.subr.mxu0 0.0
      %454 = vmatpush1.msra.mxu0 %v274
      %455 = vmatprep.subr.mxu0 0.0
      %456 = vmatpush1.msra.mxu0 %v273
      %457 = vmatprep.subr.mxu0 0.0
      %458 = vmatpush2.msra.mxu0 0.0
      %459 = vmatprep.subr.mxu0 0.0
      %460 = vmatpush2.msra.mxu0 0.0
      %461 = vmatprep.subr.mxu0 0.0
      %462 = vmatpush2.msra.mxu0 0.0
      %463 = vmatprep.subr.mxu0 0.0
      %464 = vmatpush2.msra.mxu0 0.0
      %465 = vmatprep.subr.mxu0 0.0
      %466 = vmatpush2.msra.mxu0 0.0
      %467 = vmatprep.subr.mxu0 0.0
      %468 = vmatpush2.msra.mxu0 0.0
      %469 = vmatprep.subr.mxu0 0.0
      %470 = vmatpush2.msra.mxu0 0.0
      %471 = vmatprep.subr.mxu0 0.0
      %472 = vmatpush2.msra.mxu0 0.0
      %473 = vmatprep.subr.mxu0 0.0
      %474 = vmatpush2.msra.mxu0 0.0
      %475 = vmatprep.subr.mxu0 0.0
      %476 = vmatpush2.msra.mxu0 0.0
      %477 = vmatprep.subr.mxu0 0.0
      %478 = vmatpush2.msra.mxu0 0.0
      %479 = vmatprep.subr.mxu0 0.0
      %480 = vmatpush2.msra.mxu0 0.0
      %481 = vmatprep.subr.mxu0 0.0
      %482 = vmatpush2.msra.mxu0 0.0
      %483 = vmatprep.subr.mxu0 0.0
      %484 = vmatpush2.msra.mxu0 0.0
      %485 = vmatprep.subr.mxu0 0.0
      %486 = vmatpush2.msra.mxu0 0.0
      %487 = vmatprep.subr.mxu0 0.0
      %488 = vmatpush2.msra.mxu0 0.0
      %489 = vmatprep.mubr.f32.mxu0 0.0
      %490 = vmatmul.mubr.f32.gmra.mxu0 %v283
      %v491 = vpop.f32.mrf.mxu0
      %v492 = vadd.f32 %v422, %v491
      %v493 = vpop.f32.mrf.mxu0
      %494 = vdwg.mxu0
      %495 = vst [vmem:[%s198] sm:$0xff] %v492
      %p496 = scmp.eq.s32.totalorder %s20, 0
      // Predicated region
      $region29: #{encoder_forward.2} parent=27 // pred_check
        %p497 = pneg %p496
      $region30: #{encoder_forward.2} parent=27 // pred_check_branch
        %499 = sbr.rel (%p497) target = $region32
      $region31: #{encoder_forward.2} parent=27 // pred_region
        %500 = vst [vmem:[%s203] sm:$0xff] 0.0
      $region32: #{encoder_forward.2} parent=27 // pred_fallthru
        _
      %v501 = vrot.slane %v492, 4
      %v502 = vadd.f32 %v492, %v501
      %v503 = vrot.slane %v502, 2
      %v504 = vadd.f32 %v502, %v503
      %v505 = vrot.slane %v504, 1
      %v506 = vadd.f32 %v504, %v505
      %v507 = vmul.f32 %v492, %v492
      %v508 = vrot.slane %v507, 4
      %v509 = vadd.f32 %v507, %v508
      %v510 = vrot.slane %v509, 2
      %v511 = vadd.f32 %v509, %v510
      %v512 = vrot.slane %v511, 1
      %v513 = vadd.f32 %v511, %v512
      %515 = vrot.lane.b32.xlu0 %v492, 120
      %v516 = vpop.permute.xlu0 %515
      %v518 = vmul.f32 %v492, %v516
      %v519 = vrot.slane %v518, 4
      %v520 = vadd.f32 %v518, %v519
      %v521 = vrot.slane %v520, 2
      %v522 = vadd.f32 %v520, %v521
      %v523 = vrot.slane %v522, 1
      %v524 = vadd.f32 %v522, %v523
      %v525 = vld [vmem:[%s203] sm:$0x1]
      %v526 = vadd.f32 %v525, %v506
      %527 = vst [vmem:[%s203] sm:$0x1] %v526
      %v528 = vld [vmem:[%s203 + $0x1] sm:$0x1]
      %v529 = vadd.f32 %v528, %v513
      %530 = vst [vmem:[%s203 + $0x1] sm:$0x1] %v529
      %v531 = vld [vmem:[%s203 + $0x2] sm:$0x1]
      %v532 = vadd.f32 %v531, %v524
      %533 = vst [vmem:[%s203 + $0x2] sm:$0x1] %v532
      %s534 = sadd.s32 %s19, %s20
      %p535 = scmp.lt.s32.totalorder %s534, 1
      %s536 = scalar_select %p535, %s534, 1
      %s537 = smul.addr %s536, 8
      %s538 = scalar_lea.vmem %s2, %s537
      %p539 = scmp.lt.s32.totalorder %s19, 1
      %s540 = scalar_select %p539, %s19, 1
      %s541 = smul.addr %s540, 8
      %s542 = scalar_lea.vmem %s3, %s541
      // Predicated region
      $region33: #{encoder_forward.2} parent=27 // pred_check
        %p543 = pneg %p96
      $region34: #{encoder_forward.2} parent=27 // pred_check_branch
        %545 = sbr.rel (%p543) target = $region36
      $region35: #{encoder_forward.2} parent=27 // pred_region
        %s546 = sadd.s32 %s19, %s20
      $region36: #{encoder_forward.2} parent=27 // pred_fallthru
        _
      // Predicated region
      $region37: #{encoder_forward.2} parent=27 // pred_check
        %p547 = pneg %p122
      $region38: #{encoder_forward.2} parent=27 // pred_check_branch
        %549 = sbr.rel (%p547) target = $region40
      $region39: #{encoder_forward.2} parent=27 // pred_region
        _
      $region40: #{encoder_forward.2} parent=27 // pred_fallthru
        _
    $region28: #{encoder_forward.2} parent=5 // pred_fallthru
      _
    %p550 = scmp.le.s32.totalorder 2, %s10
    // Predicated region
    $region41: #{encoder_forward.2} parent=5 // pred_check
      %p551 = pneg %p550
    $region42: #{encoder_forward.2} parent=5 // pred_check_branch
      %553 = sbr.rel (%p551) target = $region44
    $region43: #{encoder_forward.2} parent=5 // pred_region
      %s554 = ssub.s32 %s10, 2
      // Predicated region
      $region45: #{encoder_forward.2} parent=43 // pred_check
        %p555 = pneg %p102
      $region46: #{encoder_forward.2} parent=43 // pred_check_branch
        %557 = sbr.rel (%p555) target = $region48
      $region47: #{encoder_forward.2} parent=43 // pred_region
        %s558 = sadd.s32 %s21, %s22
        %p559 = scmp.lt.s32.totalorder %s558, 1
        %s560 = scalar_select %p559, %s558, 1
        %s561 = smul.addr %s560, 8
        %s562 = scalar_lea.vmem %s2, %s561
      $region48: #{encoder_forward.2} parent=43 // pred_fallthru
        _
      // Predicated region
      $region49: #{encoder_forward.2} parent=43 // pred_check
        %p563 = pneg %p128
      $region50: #{encoder_forward.2} parent=43 // pred_check_branch
        %565 = sbr.rel (%p563) target = $region52
      $region51: #{encoder_forward.2} parent=43 // pred_region
        %p566 = scmp.lt.s32.totalorder %s21, 1
        %s567 = scalar_select %p566, %s21, 1
        %s568 = smul.addr %s567, 8
        %s569 = scalar_lea.vmem %s3, %s568
      $region52: #{encoder_forward.2} parent=43 // pred_fallthru
        _
    $region44: #{encoder_forward.2} parent=5 // pred_fallthru
      _
  $region6: #{encoder_forward.2} parent=0 // loop_footer
    %s14 = sadd.s32 1, %s10
  $region7: #{encoder_forward.2} parent=0 // loop_footer_branch
    %9 = sbr.rel target = $region3
  $region8: #{encoder_forward.2} parent=0 // loop_exit
    _

// kernel: encoder_forward.3
$region0: #{encoder_forward.3}
  #allocation0 [shape = 'u32[]', space=smem, size = 0x4, offset = 0x4, fixed_abs, tag = 'smem constant byte address 0x4 - core index']
  #allocation1 [shape = 'u32[144,128]{1,0:T(1,128)}', space=vmem, size = 0x12000, scoped, tag = 'internal scratch']
  %s0 = inlined_call_operand.vmem [shape: f32[16,128], index: 0, kind: input, shape index: {}]
  %s1 = inlined_call_operand.vmem [shape: f32[128,128], index: 1, kind: input, shape index: {}]
  %s2 = inlined_call_operand.vmem [shape: f32[1,128], index: 2, kind: input, shape index: {}]
  %s3 = inlined_call_operand.vmem [shape: f32[16,128], index: 3, kind: output, shape index: {}]
  %s4 = sld [smem:[#allocation0]]
  $region22: #{encoder_forward.3} parent=0
    _
  %s6 = ssub.s32 1, %s4
  %s7 = scalar_select 0, %s6, %s4
  // Predicated region
  $region2: #{encoder_forward.3} parent=0 // pred_check
    _
  $region3: #{encoder_forward.3} parent=0 // pred_check_branch
    %9 = sbr.rel (0) target = $region5
  $region4: #{encoder_forward.3} parent=0 // pred_region
    _
  $region5: #{encoder_forward.3} parent=0 // pred_fallthru
    _
  // Predicated region
  $region6: #{encoder_forward.3} parent=0 // pred_check
    _
  $region7: #{encoder_forward.3} parent=0 // pred_check_branch
    %11 = sbr.rel (0) target = $region9
  $region8: #{encoder_forward.3} parent=0 // pred_region
    _
  $region9: #{encoder_forward.3} parent=0 // pred_fallthru
    _
  // Predicated region
  $region10: #{encoder_forward.3} parent=0 // pred_check
    _
  $region11: #{encoder_forward.3} parent=0 // pred_check_branch
    %13 = sbr.rel (0) target = $region13
  $region12: #{encoder_forward.3} parent=0 // pred_region
    _
  $region13: #{encoder_forward.3} parent=0 // pred_fallthru
    _
  %v14 = vld [vmem:[%s0] sm:$0xff]
  %v15 = vld [vmem:[%s0 + $0x8] sm:$0xff]
  %v16 = vld [vmem:[%s1] sm:$0xff]
  %v17 = vld [vmem:[%s1 + $0x8] sm:$0xff]
  %v18 = vld [vmem:[%s1 + $0x10] sm:$0xff]
  %v19 = vld [vmem:[%s1 + $0x18] sm:$0xff]
  %v20 = vld [vmem:[%s1 + $0x20] sm:$0xff]
  %v21 = vld [vmem:[%s1 + $0x28] sm:$0xff]
  %v22 = vld [vmem:[%s1 + $0x30] sm:$0xff]
  %v23 = vld [vmem:[%s1 + $0x38] sm:$0xff]
  %v24 = vld [vmem:[%s1 + $0x40] sm:$0xff]
  %v25 = vld [vmem:[%s1 + $0x48] sm:$0xff]
  %v26 = vld [vmem:[%s1 + $0x50] sm:$0xff]
  %v27 = vld [vmem:[%s1 + $0x58] sm:$0xff]
  %v28 = vld [vmem:[%s1 + $0x60] sm:$0xff]
  %v29 = vld [vmem:[%s1 + $0x68] sm:$0xff]
  %v30 = vld [vmem:[%s1 + $0x70] sm:$0xff]
  %v31 = vld [vmem:[%s1 + $0x78] sm:$0xff]
  %v32 = vld [vmem:[%s2] sm:$0x1]
  %v34 = vlaneseq
  %v35 = vshrl.u32 %v34, 7
  %v36 = vsub.s32 0, %v35
  %v37 = vrot.slane %v32, %v36
  %39 = vmatprep.subr.mxu0 0.0
  %40 = vmatpush1.msra.mxu0 %v31
  %41 = vmatprep.subr.mxu0 0.0
  %42 = vmatpush1.msra.mxu0 %v30
  %43 = vmatprep.subr.mxu0 0.0
  %44 = vmatpush1.msra.mxu0 %v29
  %45 = vmatprep.subr.mxu0 0.0
  %46 = vmatpush1.msra.mxu0 %v28
  %47 = vmatprep.subr.mxu0 0.0
  %48 = vmatpush1.msra.mxu0 %v27
  %49 = vmatprep.subr.mxu0 0.0
  %50 = vmatpush1.msra.mxu0 %v26
  %51 = vmatprep.subr.mxu0 0.0
  %52 = vmatpush1.msra.mxu0 %v25
  %53 = vmatprep.subr.mxu0 0.0
  %54 = vmatpush1.msra.mxu0 %v24
  %55 = vmatprep.subr.mxu0 0.0
  %56 = vmatpush1.msra.mxu0 %v23
  %57 = vmatprep.subr.mxu0 0.0
  %58 = vmatpush1.msra.mxu0 %v22
  %59 = vmatprep.subr.mxu0 0.0
  %60 = vmatpush1.msra.mxu0 %v21
  %61 = vmatprep.subr.mxu0 0.0
  %62 = vmatpush1.msra.mxu0 %v20
  %63 = vmatprep.subr.mxu0 0.0
  %64 = vmatpush1.msra.mxu0 %v19
  %65 = vmatprep.subr.mxu0 0.0
  %66 = vmatpush1.msra.mxu0 %v18
  %67 = vmatprep.subr.mxu0 0.0
  %68 = vmatpush1.msra.mxu0 %v17
  %69 = vmatprep.subr.mxu0 0.0
  %70 = vmatpush1.msra.mxu0 %v16
  %71 = vmatprep.subr.mxu0 0.0
  %72 = vmatpush2.msra.mxu0 0.0
  %73 = vmatprep.subr.mxu0 0.0
  %74 = vmatpush2.msra.mxu0 0.0
  %75 = vmatprep.subr.mxu0 0.0
  %76 = vmatpush2.msra.mxu0 0.0
  %77 = vmatprep.subr.mxu0 0.0
  %78 = vmatpush2.msra.mxu0 0.0
  %79 = vmatprep.subr.mxu0 0.0
  %80 = vmatpush2.msra.mxu0 0.0
  %81 = vmatprep.subr.mxu0 0.0
  %82 = vmatpush2.msra.mxu0 0.0
  %83 = vmatprep.subr.mxu0 0.0
  %84 = vmatpush2.msra.mxu0 0.0
  %85 = vmatprep.subr.mxu0 0.0
  %86 = vmatpush2.msra.mxu0 0.0
  %87 = vmatprep.subr.mxu0 0.0
  %88 = vmatpush2.msra.mxu0 0.0
  %89 = vmatprep.subr.mxu0 0.0
  %90 = vmatpush2.msra.mxu0 0.0
  %91 = vmatprep.subr.mxu0 0.0
  %92 = vmatpush2.msra.mxu0 0.0
  %93 = vmatprep.subr.mxu0 0.0
  %94 = vmatpush2.msra.mxu0 0.0
  %95 = vmatprep.subr.mxu0 0.0
  %96 = vmatpush2.msra.mxu0 0.0
  %97 = vmatprep.subr.mxu0 0.0
  %98 = vmatpush2.msra.mxu0 0.0
  %99 = vmatprep.subr.mxu0 0.0
  %100 = vmatpush2.msra.mxu0 0.0
  %101 = vmatprep.subr.mxu0 0.0
  %102 = vmatpush2.msra.mxu0 0.0
  %103 = vmatprep.mubr.f32.mxu0 0.0
  %104 = vmatmul.mubr.f32.gmra.mxu0 %v14
  %v105 = vpop.f32.mrf.mxu0
  %v106 = vadd.f32 %v37, %v105
  %v107 = vpop.f32.mrf.mxu0
  %108 = vmatprep.mubr.f32.mxu0 0.0
  %109 = vmatmul.mubr.f32.gmra.mxu0 %v15
  %v110 = vpop.f32.mrf.mxu0
  %v111 = vadd.f32 %v37, %v110
  %v112 = vpop.f32.mrf.mxu0
  %113 = vdwg.mxu0
  %vm114 = vcmp.ge.f32.partialorder %v106, 0.0
  %vm115 = vcmp.ge.f32.partialorder %v111, 0.0
  %v116 = vmul.f32 %v106, 0.01
  %v117 = vmul.f32 %v111, 0.01
  %v118 = vsel %vm114, %v106, %v116
  %v119 = vsel %vm115, %v111, %v117
  %120 = vst [vmem:[%s3] sm:$0xff] %v118
  %121 = vst [vmem:[%s3 + $0x8] sm:$0xff] %v119
  // Predicated region
  $region14: #{encoder_forward.3} parent=0 // pred_check
    _
  $region15: #{encoder_forward.3} parent=0 // pred_check_branch
    %123 = sbr.rel (0) target = $region17
  $region16: #{encoder_forward.3} parent=0 // pred_region
    _
  $region17: #{encoder_forward.3} parent=0 // pred_fallthru
    _
  // Predicated region
  $region18: #{encoder_forward.3} parent=0 // pred_check
    _
  $region19: #{encoder_forward.3} parent=0 // pred_check_branch
    %125 = sbr.rel (0) target = $region21
  $region20: #{encoder_forward.3} parent=0 // pred_region
    _
  $region21: #{encoder_forward.3} parent=0 // pred_fallthru
    _

</llo_original>
